<compile_context>
chip_gen: v7x
topology: tpu7x:2x2x1
jax: 0.10.0
libtpu: 0.0.40
codegen_flags: <defaults>
</compile_context>

<pallas_src>
import functools

import jax
import jax.numpy as jnp
from jax.experimental import pallas as pl
from jax.experimental.pallas import tpu as pltpu


def _round_up(a, b):
    return (a + b - 1) // b * b


def _cdiv(a, b):
    return (a + b - 1) // b


def _vmem_capacity_bytes():
    try:
        cap = int(pltpu.get_tpu_info().vmem_capacity_bytes)
        if cap > 0:
            return cap
    except Exception:
        pass
    return 64 << 20  # conservative fallback (v7x per-TC VMEM)


_VMEM_CAP = _vmem_capacity_bytes()
# Leave headroom for compiler-internal scratch rather than using full physical.
_VMEM_USABLE = max(32 << 20, _VMEM_CAP - (8 << 20))


def _gelu_new(x):
    # GPT-2 "gelu_new": 0.5 * x * (1 + tanh(sqrt(2/pi) * (x + 0.044715 * x^3)))
    c = 0.7978845608028654  # sqrt(2 / pi), hoisted constant
    return 0.5 * x * (1.0 + jnp.tanh(c * (x + 0.044715 * (x * x * x))))


def _mlp_resident_kernel(x_ref, w1_ref, b1_ref, w2_ref, b2_ref, o_ref):
    # x_ref: (tm, D)  w1_ref: (D, I)  b1_ref: (1, I)  w2_ref: (I, D)
    # b2_ref: (1, D)  o_ref: (tm, D)
    h = jnp.dot(x_ref[...], w1_ref[...], preferred_element_type=jnp.float32)
    h = _gelu_new(h + b1_ref[...])
    o = jnp.dot(h.astype(w2_ref.dtype), w2_ref[...],
                preferred_element_type=jnp.float32)
    # TODO(synk): training-mode resid_pdrop dropout not applied (eval-only).
    o_ref[...] = (o + b2_ref[...]).astype(o_ref.dtype)


def _mlp_streamed_kernel(x_ref, w1_ref, b1_ref, w2_ref, b2_ref, o_ref, acc_ref):
    # x_ref: (tm, D)  w1_ref: (D, ti)  b1_ref: (1, ti)  w2_ref: (ti, D)
    # b2_ref: (1, D)  o_ref: (tm, D)   acc_ref: (tm, D) f32
    k = pl.program_id(1)

    @pl.when(k == 0)
    def _():
        acc_ref[...] = jnp.zeros_like(acc_ref)

    h = jnp.dot(x_ref[...], w1_ref[...], preferred_element_type=jnp.float32)
    h = _gelu_new(h + b1_ref[...])
    acc_ref[...] += jnp.dot(h.astype(w2_ref.dtype), w2_ref[...],
                            preferred_element_type=jnp.float32)

    @pl.when(k == pl.num_programs(1) - 1)
    def _():
        # TODO(synk): training-mode resid_pdrop dropout not applied (eval-only).
        o_ref[...] = (acc_ref[...] + b2_ref[...]).astype(o_ref.dtype)


def _pick_ti(I, max_ti=2048):
    # Prefer the largest 128-aligned divisor of I (<= max_ti) so no hidden
    # columns are padded (e.g. I=6400 -> 1280, not 1024-with-12%-padding).
    if I % 128 == 0:
        for cand in range(max_ti, 0, -128):
            if I % cand == 0:
                return cand
    return min(max_ti, _round_up(I, 128))


@functools.partial(jax.jit,
                   static_argnames=("tm", "ti", "compute_dtype", "resident"))
def gpt2_mlp_pallas(x, w1, b1, w2, b2, tm=None, ti=None,
                    compute_dtype=jnp.bfloat16, resident=None):
    """x: (batch, seq, D); w1: (D, I); b1: (I,); w2: (I, D); b2: (D,)."""
    batch, seq, D = x.shape
    I = w1.shape[1]
    M = batch * seq
    out_dtype = x.dtype
    cb = jnp.dtype(compute_dtype).itemsize
    ob = jnp.dtype(out_dtype).itemsize

    # --- row tile ----------------------------------------------------------
    if tm is None:
        if M <= 128:
            tm = _round_up(M, 16)
        else:
            # >= 2 row tiles so the "parallel" axis can shard across the two
            # v7x TensorCores; cap at 512 (well past the v7x/v5e roofline knee
            # once weights are resident or streamed at this intensity).
            n_row = max(2, _cdiv(M, 512))
            tm = min(512, _round_up(_cdiv(M, n_row), 16))
    tm = min(tm, _round_up(M, 16))
    assert tm % 8 == 0, "tm must be a multiple of 8"

    # --- VMEM budgets (include the h intermediate + its cast copy) ----------
    def resident_vmem(tm_):
        weights = 2 * (2 * D * I * cb + I * 4 + D * 4)   # dbl-buffered allocs
        xo = 2 * tm_ * D * (cb + ob)                     # x + out tiles
        inter = tm_ * I * (4 + cb)                       # h f32 + bf16 copy
        return weights + xo + inter + (4 << 20)

    def streamed_vmem(tm_, ti_):
        tile = (tm_ * D * cb + D * ti_ * cb + ti_ * 4
                + ti_ * D * cb + D * 4 + tm_ * D * ob)
        inter = tm_ * ti_ * (4 + cb)                     # h f32 + bf16 copy
        acc = tm_ * D * 4
        return 2 * tile + inter + acc + (4 << 20)

    # --- path selection ------------------------------------------------------
    use_resident = resident
    tm_res = tm
    if use_resident is None:
        if resident_vmem(tm_res) <= _VMEM_USABLE:
            use_resident = True
        elif tm_res > 256 and resident_vmem(256) <= _VMEM_USABLE:
            use_resident = True
            tm_res = 256
        else:
            use_resident = False

    x2 = x.reshape(M, D)
    # NOTE: astype below is a no-op when callers pass pre-cast bf16 weights;
    # for repeated layer calls, pre-cast weights once outside this function.
    b2_2 = b2.reshape(1, D).astype(jnp.float32)

    if use_resident:
        # ---------------- resident-weights fast path ------------------------
        tm = tm_res
        M_pad = _round_up(M, tm)
        if M_pad != M:
            x2 = jnp.pad(x2, ((0, M_pad - M), (0, 0)))
        x2 = x2.astype(compute_dtype)
        w1c = w1.astype(compute_dtype)
        w2c = w2.astype(compute_dtype)
        b1_2 = b1.reshape(1, I).astype(jnp.float32)
        vmem_limit = int(min(max(resident_vmem(tm), 32 << 20), _VMEM_USABLE))

        out2 = pl.pallas_call(
            _mlp_resident_kernel,
            out_shape=jax.ShapeDtypeStruct((M_pad, D), out_dtype),
            grid_spec=pltpu.PrefetchScalarGridSpec(
                num_scalar_prefetch=0,
                grid=(M_pad // tm,),
                in_specs=[
                    pl.BlockSpec((tm, D), lambda i: (i, 0)),   # x row-tile
                    pl.BlockSpec((D, I), lambda i: (0, 0)),    # W1 (resident)
                    pl.BlockSpec((1, I), lambda i: (0, 0)),    # b1 (resident)
                    pl.BlockSpec((I, D), lambda i: (0, 0)),    # W2 (resident)
                    pl.BlockSpec((1, D), lambda i: (0, 0)),    # b2 (resident)
                ],
                out_specs=pl.BlockSpec((tm, D), lambda i: (i, 0)),
            ),
            compiler_params=pltpu.CompilerParams(
                dimension_semantics=("parallel",),
                vmem_limit_bytes=vmem_limit),
        )(x2, w1c, b1_2, w2c, b2_2)
        return out2[:M].reshape(batch, seq, D)

    # ---------------- streamed-K path (weights too big for VMEM) ------------
    if ti is None:
        ti = _pick_ti(I)
    assert ti % 128 == 0, "ti must be a multiple of 128"

    # Shrink tiles until the double-buffered working set fits the VMEM budget.
    while streamed_vmem(tm, ti) > _VMEM_USABLE:
        if ti > 512:
            ti = _round_up(ti // 2, 128)
        elif tm > 128:
            tm = _round_up(tm // 2, 16)
        else:
            break

    M_pad = _round_up(M, tm)
    I_pad = _round_up(I, ti)

    if M_pad != M:
        x2 = jnp.pad(x2, ((0, M_pad - M), (0, 0)))
    if I_pad != I:
        w1 = jnp.pad(w1, ((0, 0), (0, I_pad - I)))
        b1 = jnp.pad(b1, (0, I_pad - I))
        w2 = jnp.pad(w2, ((0, I_pad - I), (0, 0)))
    x2 = x2.astype(compute_dtype)
    w1c = w1.astype(compute_dtype)
    w2c = w2.astype(compute_dtype)
    b1_2 = b1.reshape(1, I_pad).astype(jnp.float32)

    grid = (M_pad // tm, I_pad // ti)
    vmem_limit = int(min(max(streamed_vmem(tm, ti), 32 << 20), _VMEM_USABLE))

    out2 = pl.pallas_call(
        _mlp_streamed_kernel,
        out_shape=jax.ShapeDtypeStruct((M_pad, D), out_dtype),
        grid_spec=pltpu.PrefetchScalarGridSpec(
            num_scalar_prefetch=0,
            grid=grid,
            in_specs=[
                pl.BlockSpec((tm, D), lambda i, k: (i, 0)),   # x row-tile
                pl.BlockSpec((D, ti), lambda i, k: (0, k)),   # W1 col-tile
                pl.BlockSpec((1, ti), lambda i, k: (0, k)),   # b1 tile
                pl.BlockSpec((ti, D), lambda i, k: (k, 0)),   # W2 row-tile
                pl.BlockSpec((1, D), lambda i, k: (0, 0)),    # b2
            ],
            out_specs=pl.BlockSpec((tm, D), lambda i, k: (i, 0)),
            scratch_shapes=[pltpu.VMEM((tm, D), jnp.float32)],
        ),
        compiler_params=pltpu.CompilerParams(
            dimension_semantics=("parallel", "arbitrary"),
            vmem_limit_bytes=vmem_limit),
    )(x2, w1c, b1_2, w2c, b2_2)

    return out2[:M].reshape(batch, seq, D)


def gpt2_mlp_reference(x, w1, b1, w2, b2):
    h = jnp.dot(x, w1) + b1
    h = _gelu_new(h)
    return jnp.dot(h, w2) + b2


if __name__ == "__main__":
    # Module config: embd_dim=32, intermediate_dim=4*embd_dim, batch=2, seq=8.
    batch, seq, embd_dim = 2, 8, 32
    intermediate_dim = 4 * embd_dim

    key = jax.random.PRNGKey(0)
    kx, k1, k2 = jax.random.split(key, 3)

    x = jax.random.normal(kx, (batch, seq, embd_dim), dtype=jnp.float32)
    # GPT-2 style init: N(0, 0.02) weights, zero biases.
    w1 = 0.02 * jax.random.normal(k1, (embd_dim, intermediate_dim), jnp.float32)
    b1 = jnp.zeros((intermediate_dim,), jnp.float32)
    w2 = 0.02 * jax.random.normal(k2, (intermediate_dim, embd_dim), jnp.float32)
    b2 = jnp.zeros((embd_dim,), jnp.float32)

    ref = gpt2_mlp_reference(x, w1, b1, w2, b2)

    # f32 compute path (resident weights): tight check against the reference.
    out_f32 = jax.block_until_ready(
        gpt2_mlp_pallas(x, w1, b1, w2, b2, compute_dtype=jnp.float32))
    assert out_f32.shape == (batch, seq, embd_dim)
    assert jnp.allclose(out_f32, ref, atol=1e-5, rtol=1e-5), "f32 mismatch"

    # Default bf16-matmul / f32-accumulate path: loose check.
    out_bf16 = jax.block_until_ready(gpt2_mlp_pallas(x, w1, b1, w2, b2))
    assert jnp.allclose(out_bf16, ref, atol=5e-3, rtol=5e-2), "bf16 mismatch"

    # Larger shape: ragged M (padding), both resident and streamed paths.
    bL, sL, dL, iL = 3, 50, 128, 512   # M=150
    kxL, k3, k4 = jax.random.split(jax.random.PRNGKey(1), 3)
    xL = jax.random.normal(kxL, (bL, sL, dL), jnp.float32)
    w1L = 0.02 * jax.random.normal(k3, (dL, iL), jnp.float32)
    b1L = 0.01 * jnp.ones((iL,), jnp.float32)
    w2L = 0.02 * jax.random.normal(k4, (iL, dL), jnp.float32)
    b2L = 0.01 * jnp.ones((dL,), jnp.float32)
    refL = gpt2_mlp_reference(xL, w1L, b1L, w2L, b2L)

    outL_res = jax.block_until_ready(gpt2_mlp_pallas(xL, w1L, b1L, w2L, b2L))
    assert outL_res.shape == (bL, sL, dL)
    assert jnp.allclose(outL_res, refL, atol=5e-3, rtol=5e-2), "resident mismatch"

    # Force the streamed-K (I split into two reduction tiles) fallback path.
    outL_str = jax.block_until_ready(
        gpt2_mlp_pallas(xL, w1L, b1L, w2L, b2L, tm=64, ti=256, resident=False))
    assert jnp.allclose(outL_str, refL, atol=5e-3, rtol=5e-2), "streamed mismatch"

    print("KERNEL_OK")
</pallas_src>

<mosaic_0001>
module attributes {stable_mosaic.version = 11 : i64} {
  func.func @_mlp_resident_kernel(%arg0: i32, %arg1: memref<16x32xf32, #tpu.memory_space<vmem>>, %arg2: memref<32x128xf32, #tpu.memory_space<vmem>>, %arg3: memref<1x128xf32, #tpu.memory_space<vmem>>, %arg4: memref<128x32xf32, #tpu.memory_space<vmem>>, %arg5: memref<1x32xf32, #tpu.memory_space<vmem>>, %arg6: memref<16x32xf32, #tpu.memory_space<vmem>>) attributes {dimension_semantics = [#tpu.dimension_semantics<parallel>], iteration_bounds = array<i64: 1>, scalar_prefetch = 0 : i64, scratch_operands = 0 : i64, tpu.core_type = #tpu.core_type<tc>, window_params = [{transform_indices = @transform_0, window_bounds = array<i64: 16, 32>}, {pipeline_mode = #tpu.pipeline_mode<synchronous>, transform_indices = @transform_1, window_bounds = array<i64: 32, 128>}, {pipeline_mode = #tpu.pipeline_mode<synchronous>, transform_indices = @transform_2, window_bounds = array<i64: 1, 128>}, {pipeline_mode = #tpu.pipeline_mode<synchronous>, transform_indices = @transform_3, window_bounds = array<i64: 128, 32>}, {pipeline_mode = #tpu.pipeline_mode<synchronous>, transform_indices = @transform_4, window_bounds = array<i64: 1, 32>}, {transform_indices = @transform_5, window_bounds = array<i64: 16, 32>}]} {
    %c0 = arith.constant 0 : index
    %c0_0 = arith.constant 0 : index
    %0 = vector.load %arg1[%c0, %c0_0] : memref<16x32xf32, #tpu.memory_space<vmem>>, vector<16x32xf32>
    %c0_1 = arith.constant 0 : index
    %c0_2 = arith.constant 0 : index
    %1 = vector.load %arg2[%c0_1, %c0_2] : memref<32x128xf32, #tpu.memory_space<vmem>>, vector<32x128xf32>
    %cst = arith.constant dense<0.000000e+00> : vector<16x128xf32>
    %2 = tpu.matmul %0, %1, %cst {dimension_numbers = #tpu.dot_dimension_numbers<[1], [0], [0], [1], [0, 0, 1, 1], [], []>} : vector<16x32xf32>, vector<32x128xf32>, vector<16x128xf32> -> vector<16x128xf32>
    %c0_3 = arith.constant 0 : index
    %c0_4 = arith.constant 0 : index
    %3 = vector.load %arg3[%c0_3, %c0_4] : memref<1x128xf32, #tpu.memory_space<vmem>>, vector<1x128xf32>
    %4 = vector.broadcast %3 : vector<1x128xf32> to vector<16x128xf32>
    %5 = arith.addf %2, %4 : vector<16x128xf32>
    %cst_5 = arith.constant 5.000000e-01 : f32
    %6 = vector.broadcast %cst_5 : f32 to vector<16x128xf32>
    %7 = arith.mulf %6, %5 : vector<16x128xf32>
    %8 = arith.mulf %5, %5 : vector<16x128xf32>
    %9 = arith.mulf %8, %5 : vector<16x128xf32>
    %cst_6 = arith.constant 4.471500e-02 : f32
    %10 = vector.broadcast %cst_6 : f32 to vector<16x128xf32>
    %11 = arith.mulf %10, %9 : vector<16x128xf32>
    %12 = arith.addf %5, %11 : vector<16x128xf32>
    %cst_7 = arith.constant 0.797884583 : f32
    %13 = vector.broadcast %cst_7 : f32 to vector<16x128xf32>
    %14 = arith.mulf %13, %12 : vector<16x128xf32>
    %15 = math.tanh %14 : vector<16x128xf32>
    %cst_8 = arith.constant 1.000000e+00 : f32
    %16 = vector.broadcast %cst_8 : f32 to vector<16x128xf32>
    %17 = arith.addf %16, %15 : vector<16x128xf32>
    %18 = arith.mulf %7, %17 : vector<16x128xf32>
    %c0_9 = arith.constant 0 : index
    %c0_10 = arith.constant 0 : index
    %19 = vector.load %arg4[%c0_9, %c0_10] : memref<128x32xf32, #tpu.memory_space<vmem>>, vector<128x32xf32>
    %cst_11 = arith.constant dense<0.000000e+00> : vector<16x32xf32>
    %20 = tpu.matmul %18, %19, %cst_11 {dimension_numbers = #tpu.dot_dimension_numbers<[1], [0], [0], [1], [0, 0, 1, 1], [], []>} : vector<16x128xf32>, vector<128x32xf32>, vector<16x32xf32> -> vector<16x32xf32>
    %c0_12 = arith.constant 0 : index
    %c0_13 = arith.constant 0 : index
    %21 = vector.load %arg5[%c0_12, %c0_13] : memref<1x32xf32, #tpu.memory_space<vmem>>, vector<1x32xf32>
    %22 = vector.broadcast %21 : vector<1x32xf32> to vector<16x32xf32>
    %23 = arith.addf %20, %22 : vector<16x32xf32>
    %c0_14 = arith.constant 0 : index
    %c0_15 = arith.constant 0 : index
    %24 = vector.load %arg6[%c0_14, %c0_15] : memref<16x32xf32, #tpu.memory_space<vmem>>, vector<16x32xf32>
    tpu.vector_store %arg6[%c0_14, %c0_15], %23 {strides = array<i32>} : memref<16x32xf32, #tpu.memory_space<vmem>>, vector<16x32xf32>,
    return
  }
  func.func @transform_0(%arg0: i32) -> (i32, i32) {
    %c0_i32 = arith.constant 0 : i32
    %c0_i32_0 = arith.constant 0 : i32
    return %arg0, %c0_i32 : i32, i32
  }
  func.func @transform_1(%arg0: i32) -> (i32, i32) {
    %c0_i32 = arith.constant 0 : i32
    %c0_i32_0 = arith.constant 0 : i32
    %c0_i32_1 = arith.constant 0 : i32
    return %c0_i32, %c0_i32_0 : i32, i32
  }
  func.func @transform_2(%arg0: i32) -> (i32, i32) {
    %c0_i32 = arith.constant 0 : i32
    %c0_i32_0 = arith.constant 0 : i32
    %c0_i32_1 = arith.constant 0 : i32
    return %c0_i32, %c0_i32_0 : i32, i32
  }
  func.func @transform_3(%arg0: i32) -> (i32, i32) {
    %c0_i32 = arith.constant 0 : i32
    %c0_i32_0 = arith.constant 0 : i32
    %c0_i32_1 = arith.constant 0 : i32
    return %c0_i32, %c0_i32_0 : i32, i32
  }
  func.func @transform_4(%arg0: i32) -> (i32, i32) {
    %c0_i32 = arith.constant 0 : i32
    %c0_i32_0 = arith.constant 0 : i32
    %c0_i32_1 = arith.constant 0 : i32
    return %c0_i32, %c0_i32_0 : i32, i32
  }
  func.func @transform_5(%arg0: i32) -> (i32, i32) {
    %c0_i32 = arith.constant 0 : i32
    %c0_i32_0 = arith.constant 0 : i32
    return %arg0, %c0_i32 : i32, i32
  }
}

</mosaic_0001>

<llo_original>
// kernel: gpt2_mlp_pallas.1
$region0: #{gpt2_mlp_pallas.1}
  #allocation0 [shape = 'u32[]', space=smem, size = 0x4, offset = 0x4, fixed_abs, tag = 'smem constant byte address 0x4 - core index']
  #allocation1 [shape = 'u32[144,128]{1,0:T(1,128)}', space=vmem, size = 0x12000, scoped, tag = 'internal scratch']
  %s0 = inlined_call_operand.vmem [shape: f32[16,32], index: 0, kind: input, shape index: {}]
  %s1 = inlined_call_operand.vmem [shape: f32[32,128], index: 1, kind: input, shape index: {}]
  %s2 = inlined_call_operand.vmem [shape: f32[1,128], index: 2, kind: input, shape index: {}]
  %s3 = inlined_call_operand.vmem [shape: f32[128,32], index: 3, kind: input, shape index: {}]
  %s4 = inlined_call_operand.vmem [shape: f32[1,32], index: 4, kind: input, shape index: {}]
  %s5 = inlined_call_operand.hbm [shape: f32[16,32], index: 5, kind: output, shape index: {}]
  %s6 = sld [smem:[#allocation0]]
  $region30: #{gpt2_mlp_pallas.1} parent=0
    _
  %s8 = ssub.s32 1, %s6
  %s9 = scalar_select 0, %s8, %s6
  $region1: #{gpt2_mlp_pallas.1} parent=0
    #allocation2 [shape = 'u8[8192]{0}', space=vmem, size = 0x2000, scoped, tag = 'output window, operand 0, single buffered']
    #allocation3 [shape = 's32[1]{0}', space=sflag, size = 0x4, scoped, tag = 'scoped memory for gpt2_mlp_pallas.1']
    %10 = vsyncpa [#allocation3], 0
    // Predicated region
    $region2: #{gpt2_mlp_pallas.1} parent=1 // pred_check
      _
    $region3: #{gpt2_mlp_pallas.1} parent=1 // pred_check_branch
      %12 = sbr.rel (0) target = $region5
    $region4: #{gpt2_mlp_pallas.1} parent=1 // pred_region
      _
    $region5: #{gpt2_mlp_pallas.1} parent=1 // pred_fallthru
      _
    // Predicated region
    $region6: #{gpt2_mlp_pallas.1} parent=1 // pred_check
      _
    $region7: #{gpt2_mlp_pallas.1} parent=1 // pred_check_branch
      %14 = sbr.rel (0) target = $region9
    $region8: #{gpt2_mlp_pallas.1} parent=1 // pred_region
      _
    $region9: #{gpt2_mlp_pallas.1} parent=1 // pred_fallthru
      _
    // Predicated region
    $region10: #{gpt2_mlp_pallas.1} parent=1 // pred_check
      _
    $region11: #{gpt2_mlp_pallas.1} parent=1 // pred_check_branch
      %16 = sbr.rel (0) target = $region13
    $region12: #{gpt2_mlp_pallas.1} parent=1 // pred_region
      _
    $region13: #{gpt2_mlp_pallas.1} parent=1 // pred_fallthru
      _
    // Predicated region
    $region14: #{gpt2_mlp_pallas.1} parent=1 // pred_check
      _
    $region15: #{gpt2_mlp_pallas.1} parent=1 // pred_check_branch
      %18 = sbr.rel (0) target = $region17
    $region16: #{gpt2_mlp_pallas.1} parent=1 // pred_region
      _
    $region17: #{gpt2_mlp_pallas.1} parent=1 // pred_fallthru
      _
    // Predicated region
    $region18: #{gpt2_mlp_pallas.1} parent=1 // pred_check
      _
    $region19: #{gpt2_mlp_pallas.1} parent=1 // pred_check_branch
      %20 = sbr.rel (0) target = $region21
    $region20: #{gpt2_mlp_pallas.1} parent=1 // pred_region
      _
    $region21: #{gpt2_mlp_pallas.1} parent=1 // pred_fallthru
      _
    %v21 = vld [vmem:[%s0] sm:$0xff]
    %v22 = vld [vmem:[%s0 + $0x8] sm:$0xff]
    %v23 = vld [vmem:[%s1] sm:$0xff]
    %v24 = vld [vmem:[%s1 + $0x8] sm:$0xff]
    %v25 = vld [vmem:[%s1 + $0x10] sm:$0xff]
    %v26 = vld [vmem:[%s1 + $0x18] sm:$0xff]
    %v27 = vld [vmem:[%s2] sm:$0x1]
    %v29 = vlaneseq
    %v30 = vshrl.u32 %v29, 7
    %v31 = vsub.s32 0, %v30
    %v32 = vrot.slane %v27, %v31
    %vm34 = vcmask 261120
    %v36 = vsel %vm34, %v21, 0
    %v39 = vsel %vm34, %v22, 0
    %41 = vmatprep.subr.mxu0 0.0
    %42 = vmatpush1.msra.mxu0 %v23
    %43 = vmatprep.subr.mxu0 0.0
    %44 = vmatpush1.msra.mxu0 %v24
    %45 = vmatprep.subr.mxu0 0.0
    %46 = vmatpush1.msra.mxu0 %v25
    %47 = vmatprep.subr.mxu0 0.0
    %48 = vmatpush1.msra.mxu0 %v26
    %49 = vmatprep.subr.mxu0 0.0
    %50 = vmatpush1.msra.mxu0 0.0
    %51 = vmatprep.subr.mxu0 0.0
    %52 = vmatpush1.msra.mxu0 0.0
    %53 = vmatprep.subr.mxu0 0.0
    %54 = vmatpush1.msra.mxu0 0.0
    %55 = vmatprep.subr.mxu0 0.0
    %56 = vmatpush1.msra.mxu0 0.0
    %57 = vmatprep.subr.mxu0 0.0
    %58 = vmatpush1.msra.mxu0 0.0
    %59 = vmatprep.subr.mxu0 0.0
    %60 = vmatpush1.msra.mxu0 0.0
    %61 = vmatprep.subr.mxu0 0.0
    %62 = vmatpush1.msra.mxu0 0.0
    %63 = vmatprep.subr.mxu0 0.0
    %64 = vmatpush1.msra.mxu0 0.0
    %65 = vmatprep.subr.mxu0 0.0
    %66 = vmatpush1.msra.mxu0 0.0
    %67 = vmatprep.subr.mxu0 0.0
    %68 = vmatpush1.msra.mxu0 0.0
    %69 = vmatprep.subr.mxu0 0.0
    %70 = vmatpush1.msra.mxu0 0.0
    %71 = vmatprep.subr.mxu0 0.0
    %72 = vmatpush1.msra.mxu0 0.0
    %73 = vmatprep.subr.mxu0 0.0
    %74 = vmatpush1.msra.mxu0 0.0
    %75 = vmatprep.subr.mxu0 0.0
    %76 = vmatpush1.msra.mxu0 0.0
    %77 = vmatprep.subr.mxu0 0.0
    %78 = vmatpush1.msra.mxu0 0.0
    %79 = vmatprep.subr.mxu0 0.0
    %80 = vmatpush1.msra.mxu0 0.0
    %81 = vmatprep.subr.mxu0 0.0
    %82 = vmatpush1.msra.mxu0 0.0
    %83 = vmatprep.subr.mxu0 0.0
    %84 = vmatpush1.msra.mxu0 0.0
    %85 = vmatprep.subr.mxu0 0.0
    %86 = vmatpush1.msra.mxu0 0.0
    %87 = vmatprep.subr.mxu0 0.0
    %88 = vmatpush1.msra.mxu0 0.0
    %89 = vmatprep.subr.mxu0 0.0
    %90 = vmatpush1.msra.mxu0 0.0
    %91 = vmatprep.subr.mxu0 0.0
    %92 = vmatpush1.msra.mxu0 0.0
    %93 = vmatprep.subr.mxu0 0.0
    %94 = vmatpush1.msra.mxu0 0.0
    %95 = vmatprep.subr.mxu0 0.0
    %96 = vmatpush1.msra.mxu0 0.0
    %97 = vmatprep.subr.mxu0 0.0
    %98 = vmatpush1.msra.mxu0 0.0
    %99 = vmatprep.subr.mxu0 0.0
    %100 = vmatpush1.msra.mxu0 0.0
    %101 = vmatprep.subr.mxu0 0.0
    %102 = vmatpush1.msra.mxu0 0.0
    %103 = vmatprep.subr.mxu0 0.0
    %104 = vmatpush1.msra.mxu0 0.0
    %105 = vmatprep.mubr.f32.mxu0 0.0
    %106 = vmatmul.mubr.f32.gmra.mrb[0].mxu0 %v36
    %v107 = vpop.f32.mrb[0].mxu0
    %v108 = vadd.f32 %v32, %v107
    %v109 = vpop.f32.mrb[0].mxu0
    %110 = vmatprep.mubr.f32.mxu0 0.0
    %111 = vmatmul.mubr.f32.gmra.mrb[0].mxu0 %v39
    %v112 = vpop.f32.mrb[0].mxu0
    %v113 = vadd.f32 %v32, %v112
    %v114 = vpop.f32.mrb[0].mxu0
    %115 = vdwg.mxu0
    %v116 = vmul.f32 %v108, 0.5
    %v117 = vmul.f32 %v113, 0.5
    %v118 = vmul.f32 %v108, %v108
    %v119 = vmul.f32 %v113, %v113
    %v120 = vmul.f32 %v118, %v108
    %v121 = vmul.f32 %v119, %v113
    %v122 = vmul.f32 %v120, 0.044715
    %v123 = vmul.f32 %v121, 0.044715
    %v124 = vadd.f32 %v108, %v122
    %v125 = vadd.f32 %v113, %v123
    %v126 = vmul.f32 %v124, 0.7978846
    %v127 = vmul.f32 %v125, 0.7978846
    %v128 = vtanh.pop %v126
    %v129 = vtanh.pop %v127
    %v130 = vadd.f32 %v128, 1.0
    %v131 = vadd.f32 %v129, 1.0
    %v132 = vmul.f32 %v116, %v130
    %v133 = vmul.f32 %v117, %v131
    %v134 = vld [vmem:[%s3] sm:$0xff]
    %v135 = vld [vmem:[%s3 + $0x8] sm:$0xff]
    %v136 = vld [vmem:[%s3 + $0x10] sm:$0xff]
    %v137 = vld [vmem:[%s3 + $0x18] sm:$0xff]
    %v138 = vld [vmem:[%s3 + $0x20] sm:$0xff]
    %v139 = vld [vmem:[%s3 + $0x28] sm:$0xff]
    %v140 = vld [vmem:[%s3 + $0x30] sm:$0xff]
    %v141 = vld [vmem:[%s3 + $0x38] sm:$0xff]
    %v142 = vld [vmem:[%s3 + $0x40] sm:$0xff]
    %v143 = vld [vmem:[%s3 + $0x48] sm:$0xff]
    %v144 = vld [vmem:[%s3 + $0x50] sm:$0xff]
    %v145 = vld [vmem:[%s3 + $0x58] sm:$0xff]
    %v146 = vld [vmem:[%s3 + $0x60] sm:$0xff]
    %v147 = vld [vmem:[%s3 + $0x68] sm:$0xff]
    %v148 = vld [vmem:[%s3 + $0x70] sm:$0xff]
    %v149 = vld [vmem:[%s3 + $0x78] sm:$0xff]
    %v150 = vld [vmem:[%s4] sm:$0x1]
    %v152 = vlaneseq
    %v153 = vshrl.u32 %v152, 7
    %v154 = vsub.s32 0, %v153
    %v155 = vrot.slane %v150, %v154
    %157 = vmatprep.subr.mxu0 0.0
    %158 = vmatpush1.msra.mxu0 %v134
    %159 = vmatprep.subr.mxu0 0.0
    %160 = vmatpush1.msra.mxu0 %v135
    %161 = vmatprep.subr.mxu0 0.0
    %162 = vmatpush1.msra.mxu0 %v136
    %163 = vmatprep.subr.mxu0 0.0
    %164 = vmatpush1.msra.mxu0 %v137
    %165 = vmatprep.subr.mxu0 0.0
    %166 = vmatpush1.msra.mxu0 %v138
    %167 = vmatprep.subr.mxu0 0.0
    %168 = vmatpush1.msra.mxu0 %v139
    %169 = vmatprep.subr.mxu0 0.0
    %170 = vmatpush1.msra.mxu0 %v140
    %171 = vmatprep.subr.mxu0 0.0
    %172 = vmatpush1.msra.mxu0 %v141
    %173 = vmatprep.subr.mxu0 0.0
    %174 = vmatpush1.msra.mxu0 %v142
    %175 = vmatprep.subr.mxu0 0.0
    %176 = vmatpush1.msra.mxu0 %v143
    %177 = vmatprep.subr.mxu0 0.0
    %178 = vmatpush1.msra.mxu0 %v144
    %179 = vmatprep.subr.mxu0 0.0
    %180 = vmatpush1.msra.mxu0 %v145
    %181 = vmatprep.subr.mxu0 0.0
    %182 = vmatpush1.msra.mxu0 %v146
    %183 = vmatprep.subr.mxu0 0.0
    %184 = vmatpush1.msra.mxu0 %v147
    %185 = vmatprep.subr.mxu0 0.0
    %186 = vmatpush1.msra.mxu0 %v148
    %187 = vmatprep.subr.mxu0 0.0
    %188 = vmatpush1.msra.mxu0 %v149
    %189 = vmatprep.subr.mxu0 0.0
    %190 = vmatpush1.msra.mxu0 0.0
    %191 = vmatprep.subr.mxu0 0.0
    %192 = vmatpush1.msra.mxu0 0.0
    %193 = vmatprep.subr.mxu0 0.0
    %194 = vmatpush1.msra.mxu0 0.0
    %195 = vmatprep.subr.mxu0 0.0
    %196 = vmatpush1.msra.mxu0 0.0
    %197 = vmatprep.subr.mxu0 0.0
    %198 = vmatpush1.msra.mxu0 0.0
    %199 = vmatprep.subr.mxu0 0.0
    %200 = vmatpush1.msra.mxu0 0.0
    %201 = vmatprep.subr.mxu0 0.0
    %202 = vmatpush1.msra.mxu0 0.0
    %203 = vmatprep.subr.mxu0 0.0
    %204 = vmatpush1.msra.mxu0 0.0
    %205 = vmatprep.subr.mxu0 0.0
    %206 = vmatpush1.msra.mxu0 0.0
    %207 = vmatprep.subr.mxu0 0.0
    %208 = vmatpush1.msra.mxu0 0.0
    %209 = vmatprep.subr.mxu0 0.0
    %210 = vmatpush1.msra.mxu0 0.0
    %211 = vmatprep.subr.mxu0 0.0
    %212 = vmatpush1.msra.mxu0 0.0
    %213 = vmatprep.subr.mxu0 0.0
    %214 = vmatpush1.msra.mxu0 0.0
    %215 = vmatprep.subr.mxu0 0.0
    %216 = vmatpush1.msra.mxu0 0.0
    %217 = vmatprep.subr.mxu0 0.0
    %218 = vmatpush1.msra.mxu0 0.0
    %219 = vmatprep.subr.mxu0 0.0
    %220 = vmatpush1.msra.mxu0 0.0
    %221 = vmatprep.mubr.f32.mxu0 0.0
    %222 = vmatmul.mubr.f32.gmra.mrb[0].mxu0 %v132
    %v223 = vpop.f32.mrb[0].mxu0
    %v224 = vadd.f32 %v155, %v223
    %v225 = vpop.f32.mrb[0].mxu0
    %226 = vmatprep.mubr.f32.mxu0 0.0
    %227 = vmatmul.mubr.f32.gmra.mrb[0].mxu0 %v133
    %v228 = vpop.f32.mrb[0].mxu0
    %v229 = vadd.f32 %v155, %v228
    %v230 = vpop.f32.mrb[0].mxu0
    %231 = vdwg.mxu0
    %232 = vst.msk [vmem:[#allocation2] sm:$0xff] %vm34, %v224
    %233 = vst.msk [vmem:[#allocation2 + $0x8] sm:$0xff] %vm34, %v229
    // Predicated region
    $region22: #{gpt2_mlp_pallas.1} parent=1 // pred_check
      _
    $region23: #{gpt2_mlp_pallas.1} parent=1 // pred_check_branch
      %235 = sbr.rel (0) target = $region25
    $region24: #{gpt2_mlp_pallas.1} parent=1 // pred_region
      %s237 = ssub.s32 256, 256
      %238 = vsyncadd [#allocation3], %s237
      %s239 = sshll.u32 [#allocation2], 4
      %s240 = int_to_ptr.vmem [resolvable:$true] %s239
      %245 = dma.vmem_to_hbm [thread:$0]  %s240, 256, %s5, [#allocation3], 128, 128, 8
    $region25: #{gpt2_mlp_pallas.1} parent=1 // pred_fallthru
      _
    // Predicated region
    $region26: #{gpt2_mlp_pallas.1} parent=1 // pred_check
      _
    $region27: #{gpt2_mlp_pallas.1} parent=1 // pred_check_branch
      %247 = sbr.rel (0) target = $region29
    $region28: #{gpt2_mlp_pallas.1} parent=1 // pred_region
      %248 = dma.done [#allocation3], 256
    $region29: #{gpt2_mlp_pallas.1} parent=1 // pred_fallthru
      _
    %249 = vsyncpa [#allocation3], 1

</llo_original>
